<compile_context>
chip_gen: v7x
topology: tpu7x:2x2x1
jax: 0.10.0
libtpu: 0.0.40
codegen_flags: <defaults>
</compile_context>

<pallas_src>
import jax
import jax.numpy as jnp
import numpy as np
from jax.experimental import pallas as pl
from jax.experimental.pallas import tpu as pltpu

EPS = 1e-5
LANE = 128


# ----------------------------------------------------------------------------- kernel
def _bn_train(h, gamma, beta):
    """h: [Tt, B, F] f32. Training-mode BN per slab: stats over axis=1 (exactly the
    original B batch rows of each fused forward pass), biased variance, eps=1e-5."""
    mean = jnp.mean(h, axis=1, keepdims=True)
    var = jnp.mean(jnp.square(h - mean), axis=1, keepdims=True)
    return (h - mean) * jax.lax.rsqrt(var + EPS) * gamma + beta


def _main_track(x, g1, be1, w1, g2, be2, w2):
    """x: [Tt, B, Cin] f32; weights bf16. Returns [Tt*B, Cout] f32 (bias added later)."""
    Tt, B, Cin = x.shape
    Cout = w1.shape[1]
    h = jnp.maximum(_bn_train(x, g1, be1), 0.0)
    # linear1 bias omitted: exactly cancelled by bn2's (training-mode) mean subtraction.
    h = jnp.dot(h.reshape(Tt * B, Cin).astype(jnp.bfloat16), w1,
                preferred_element_type=jnp.float32).reshape(Tt, B, Cout)
    h = jnp.maximum(_bn_train(h, g2, be2), 0.0)
    return jnp.dot(h.reshape(Tt * B, Cout).astype(jnp.bfloat16), w2,
                   preferred_element_type=jnp.float32)


def residual_kernel_shortcut(
    x_ref,                     # [Tt, B, Cin_pad] f32
    g1_ref, be1_ref,           # bn1 (input channels)          [1, Cin_pad] f32
    w1_ref,                    # linear1 [Cin_pad, Cout_pad]   bf16 (bias cancelled by bn2)
    g2_ref, be2_ref,           # bn2 (output channels)         [1, Cout_pad] f32
    w2_ref,                    # linear2 [Cout_pad, Cout_pad]  bf16
    bias_ref,                  # folded b2 + bs                [1, Cout_pad] f32
    ws_ref,                    # shortcut linear [Cin_pad, Cout_pad] bf16
    o_ref,                     # [Tt, B, Cout_pad] f32
):
    x = x_ref[...]
    Tt, B, Cin = x.shape
    Cout = o_ref.shape[-1]
    main = _main_track(x, g1_ref[...], be1_ref[...], w1_ref[...],
                       g2_ref[...], be2_ref[...], w2_ref[...])
    short = jnp.dot(x.reshape(Tt * B, Cin).astype(jnp.bfloat16), ws_ref[...],
                    preferred_element_type=jnp.float32)
    y = jnp.maximum(main + short + bias_ref[...], 0.0)
    o_ref[...] = y.reshape(Tt, B, Cout).astype(o_ref.dtype)


def residual_kernel_identity(
    x_ref,
    g1_ref, be1_ref,
    w1_ref,
    g2_ref, be2_ref,
    w2_ref,
    bias_ref,                  # b2 only
    o_ref,
):
    x = x_ref[...]
    Tt, B, Cin = x.shape
    Cout = o_ref.shape[-1]
    main = _main_track(x, g1_ref[...], be1_ref[...], w1_ref[...],
                       g2_ref[...], be2_ref[...], w2_ref[...])
    y = jnp.maximum(main + bias_ref[...] + x.reshape(Tt * B, Cin), 0.0)
    o_ref[...] = y.reshape(Tt, B, Cout).astype(o_ref.dtype)


# ---------------------------------------------------------------------------- wrapper
def _round_up(n, m):
    return ((n + m - 1) // m) * m


def _pad_last(a, target):
    pad = target - a.shape[-1]
    if pad == 0:
        return a
    cfg = [(0, 0)] * (a.ndim - 1) + [(0, pad)]
    return jnp.pad(a, cfg)


def _pad2(w, rows, cols):
    pr, pc = rows - w.shape[0], cols - w.shape[1]
    if pr == 0 and pc == 0:
        return w
    return jnp.pad(w, ((0, pr), (0, pc)))


def _pick_slabs_per_step(T, B, target_rows=64):
    """Largest divisor of T with ~target_rows packed MXU rows per step, keeping
    >= 2 grid steps when possible (v7x: 2 TensorCores shard the parallel axis)."""
    want = max(1, target_rows // max(B, 1))
    divs = [d for d in range(1, T + 1) if T % d == 0]
    cand = [d for d in divs if d <= want]
    tt = max(cand) if cand else 1
    if T // tt < 2:
        smaller = [d for d in divs if T // d >= 2]
        if smaller:
            ok = [d for d in smaller if d <= want]
            tt = max(ok) if ok else min(smaller)
    return tt


def residual_forward(x, params, is_shortcut=True, slabs_per_step=None):
    """x: [T, B, Cin] (or [B, Cin]) float32 — T independent forward passes fused into
    one pallas_call.  BN statistics are always over exactly the B rows of each slab.
    (B should preferably be a multiple of 8 for clean sublane layout.)"""
    squeeze_t = (x.ndim == 2)
    if squeeze_t:
        x = x[None]
    T, B, Cin = x.shape
    Cout = params["w1"].shape[1]
    Cpi = _round_up(Cin, LANE)      # lane-dense padded feature dims (128-multiple)
    Cpo = _round_up(Cout, LANE)

    Tt = _pick_slabs_per_step(T, B) if slabs_per_step is None else slabs_per_step
    assert T % Tt == 0, "slabs_per_step must divide T"
    grid_t = T // Tt

    f32, bf16 = jnp.float32, jnp.bfloat16
    # Zero-pad lane axes (padded columns stay exactly 0 through BN/ReLU/matmul);
    # matmul operands stored bf16 for MXU peak, BN/bias params stay f32.
    xp = _pad_last(x.astype(f32), Cpi)
    g1 = _pad_last(params["g1"], Cpi)
    be1 = _pad_last(params["be1"], Cpi)
    w1 = _pad2(params["w1"], Cpi, Cpo).astype(bf16)
    g2 = _pad_last(params["g2"], Cpo)
    be2 = _pad_last(params["be2"], Cpo)
    w2 = _pad2(params["w2"], Cpo, Cpo).astype(bf16)

    const2d = lambda shape: pl.BlockSpec(shape, lambda t: (0, 0))  # resident params

    args = [xp, g1, be1, w1, g2, be2, w2]
    in_specs = [
        pl.BlockSpec((Tt, B, Cpi), lambda t: (t, 0, 0)),   # x: Tt slabs per step
        const2d((1, Cpi)), const2d((1, Cpi)),              # g1, be1
        const2d((Cpi, Cpo)),                               # w1
        const2d((1, Cpo)), const2d((1, Cpo)),              # g2, be2
        const2d((Cpo, Cpo)),                               # w2
    ]
    if is_shortcut:
        bias = _pad_last(params["b2"] + params["bs"], Cpo)  # fold b2 + bs
        ws = _pad2(params["ws"], Cpi, Cpo).astype(bf16)
        args += [bias, ws]
        in_specs += [const2d((1, Cpo)), const2d((Cpi, Cpo))]
        kernel = residual_kernel_shortcut
    else:
        assert Cin == Cout, "identity shortcut requires input_channels == output_channels"
        bias = _pad_last(params["b2"], Cpo)
        args += [bias]
        in_specs += [const2d((1, Cpo))]
        kernel = residual_kernel_identity

    out = pl.pallas_call(
        kernel,
        out_shape=jax.ShapeDtypeStruct((T, B, Cpo), jnp.float32),
        grid=(grid_t,),
        in_specs=in_specs,
        out_specs=pl.BlockSpec((Tt, B, Cpo), lambda t: (t, 0, 0)),
        compiler_params=pltpu.CompilerParams(
            dimension_semantics=("parallel",),
            vmem_limit_bytes=32 * 1024 * 1024,
        ),
    )(*args)
    out = out[:, :, :Cout]          # strip lane padding
    return out[0] if squeeze_t else out


# -------------------------------------------------------------------- params & reference
def init_params(key, in_ch, out_ch):
    """PyTorch-default-style init. Linear weights stored [in_features, out_features].
    b1 (linear1 bias) is kept for the reference model only — the kernel drops it."""
    ks = jax.random.split(key, 6)

    def lin(kw, kb, fan_in, fan_out):
        bound = 1.0 / np.sqrt(fan_in)
        w = jax.random.uniform(kw, (fan_in, fan_out), jnp.float32, -bound, bound)
        b = jax.random.uniform(kb, (1, fan_out), jnp.float32, -bound, bound)
        return w, b

    w1, b1 = lin(ks[0], ks[1], in_ch, out_ch)
    w2, b2 = lin(ks[2], ks[3], out_ch, out_ch)
    ws, bs = lin(ks[4], ks[5], in_ch, out_ch)
    return dict(
        g1=jnp.ones((1, in_ch), jnp.float32), be1=jnp.zeros((1, in_ch), jnp.float32),
        w1=w1, b1=b1,
        g2=jnp.ones((1, out_ch), jnp.float32), be2=jnp.zeros((1, out_ch), jnp.float32),
        w2=w2, b2=b2,
        ws=ws, bs=bs,
    )


def _bn_ref(h, g, b):
    mean = jnp.mean(h, axis=0, keepdims=True)
    var = jnp.mean(jnp.square(h - mean), axis=0, keepdims=True)
    return (h - mean) * jax.lax.rsqrt(var + EPS) * g + b


def reference_forward(x2d, p, is_shortcut=True):
    """Plain-JAX f32 reference matching the PyTorch module exactly (keeps linear1 bias)."""
    h = jnp.maximum(_bn_ref(x2d, p["g1"], p["be1"]), 0.0)
    h = h @ p["w1"] + p["b1"]
    h = jnp.maximum(_bn_ref(h, p["g2"], p["be2"]), 0.0)
    h = h @ p["w2"] + p["b2"]
    short = (x2d @ p["ws"] + p["bs"]) if is_shortcut else x2d
    return jnp.maximum(h + short, 0.0)


def reference_forward_bf16(x2d, p, is_shortcut=True):
    """Reference performing the kernel's exact arithmetic (bf16 matmul operands,
    f32 accumulation, b1 cancelled by training-mode BN2) for a tight equivalence check."""
    dot = lambda a, b: jnp.dot(a.astype(jnp.bfloat16), b.astype(jnp.bfloat16),
                               preferred_element_type=jnp.float32)
    h = jnp.maximum(_bn_ref(x2d, p["g1"], p["be1"]), 0.0)
    h = dot(h, p["w1"])
    h = jnp.maximum(_bn_ref(h, p["g2"], p["be2"]), 0.0)
    main = dot(h, p["w2"])
    if is_shortcut:
        short = dot(x2d, p["ws"])
        bias = p["b2"] + p["bs"]
    else:
        short = x2d
        bias = p["b2"]
    return jnp.maximum(main + short + bias, 0.0)


# ------------------------------------------------------------------------------- main
if __name__ == "__main__":
    T, B, CIN, COUT = 8, 8, 16, 32
    key = jax.random.PRNGKey(0)
    kx, kp, kx2, kp2 = jax.random.split(key, 4)

    fwd = jax.jit(residual_forward, static_argnames=("is_shortcut", "slabs_per_step"))

    # Default path: is_shorcut=True (Linear shortcut), T fused forward passes.
    x = jax.random.normal(kx, (T, B, CIN), jnp.float32)
    params = init_params(kp, CIN, COUT)
    out = jax.block_until_ready(fwd(x, params, is_shortcut=True))
    ref_exact = jax.vmap(lambda xb: reference_forward_bf16(xb, params, True))(x)
    ref_f32 = jax.vmap(lambda xb: reference_forward(xb, params, True))(x)
    # Tight check vs. a reference doing the kernel's exact (bf16-in / f32-acc) math.
    np.testing.assert_allclose(np.asarray(out), np.asarray(ref_exact), rtol=1e-3, atol=1e-3)
    # Fidelity check vs. the f32 PyTorch-semantics reference (bf16 MXU inputs are the
    # only deviation).
    np.testing.assert_allclose(np.asarray(out), np.asarray(ref_f32), rtol=1e-1, atol=2e-1)

    # Identity-shortcut path (requires Cin == Cout).
    x2 = jax.random.normal(kx2, (T, B, COUT), jnp.float32)
    params2 = init_params(kp2, COUT, COUT)
    out2 = jax.block_until_ready(fwd(x2, params2, is_shortcut=False))
    ref2_exact = jax.vmap(lambda xb: reference_forward_bf16(xb, params2, False))(x2)
    ref2_f32 = jax.vmap(lambda xb: reference_forward(xb, params2, False))(x2)
    np.testing.assert_allclose(np.asarray(out2), np.asarray(ref2_exact), rtol=1e-3, atol=1e-3)
    np.testing.assert_allclose(np.asarray(out2), np.asarray(ref2_f32), rtol=1e-1, atol=2e-1)

    print("KERNEL_OK")
</pallas_src>

<mosaic_0001>
module attributes {stable_mosaic.version = 11 : i64} {
  func.func @residual_kernel_shortcut(%arg0: i32, %arg1: memref<4x8x128xf32, #tpu.memory_space<vmem>>, %arg2: memref<1x128xf32, #tpu.memory_space<vmem>>, %arg3: memref<1x128xf32, #tpu.memory_space<vmem>>, %arg4: memref<128x128xbf16, #tpu.memory_space<vmem>>, %arg5: memref<1x128xf32, #tpu.memory_space<vmem>>, %arg6: memref<1x128xf32, #tpu.memory_space<vmem>>, %arg7: memref<128x128xbf16, #tpu.memory_space<vmem>>, %arg8: memref<1x128xf32, #tpu.memory_space<vmem>>, %arg9: memref<128x128xbf16, #tpu.memory_space<vmem>>, %arg10: memref<4x8x128xf32, #tpu.memory_space<vmem>>) attributes {dimension_semantics = [#tpu.dimension_semantics<parallel>], iteration_bounds = array<i64: 2>, scalar_prefetch = 0 : i64, scratch_operands = 0 : i64, tpu.core_type = #tpu.core_type<tc>, window_params = [{transform_indices = @transform_0, window_bounds = array<i64: 4, 8, 128>}, {pipeline_mode = #tpu.pipeline_mode<synchronous>, transform_indices = @transform_1, window_bounds = array<i64: 1, 128>}, {pipeline_mode = #tpu.pipeline_mode<synchronous>, transform_indices = @transform_2, window_bounds = array<i64: 1, 128>}, {pipeline_mode = #tpu.pipeline_mode<synchronous>, transform_indices = @transform_3, window_bounds = array<i64: 128, 128>}, {pipeline_mode = #tpu.pipeline_mode<synchronous>, transform_indices = @transform_4, window_bounds = array<i64: 1, 128>}, {pipeline_mode = #tpu.pipeline_mode<synchronous>, transform_indices = @transform_5, window_bounds = array<i64: 1, 128>}, {pipeline_mode = #tpu.pipeline_mode<synchronous>, transform_indices = @transform_6, window_bounds = array<i64: 128, 128>}, {pipeline_mode = #tpu.pipeline_mode<synchronous>, transform_indices = @transform_7, window_bounds = array<i64: 1, 128>}, {pipeline_mode = #tpu.pipeline_mode<synchronous>, transform_indices = @transform_8, window_bounds = array<i64: 128, 128>}, {transform_indices = @transform_9, window_bounds = array<i64: 4, 8, 128>}]} {
    %c0 = arith.constant 0 : index
    %c0_0 = arith.constant 0 : index
    %c0_1 = arith.constant 0 : index
    %0 = vector.load %arg1[%c0, %c0_0, %c0_1] : memref<4x8x128xf32, #tpu.memory_space<vmem>>, vector<4x8x128xf32>
    %c0_2 = arith.constant 0 : index
    %c0_3 = arith.constant 0 : index
    %1 = vector.load %arg2[%c0_2, %c0_3] : memref<1x128xf32, #tpu.memory_space<vmem>>, vector<1x128xf32>
    %c0_4 = arith.constant 0 : index
    %c0_5 = arith.constant 0 : index
    %2 = vector.load %arg3[%c0_4, %c0_5] : memref<1x128xf32, #tpu.memory_space<vmem>>, vector<1x128xf32>
    %c0_6 = arith.constant 0 : index
    %c0_7 = arith.constant 0 : index
    %3 = vector.load %arg4[%c0_6, %c0_7] : memref<128x128xbf16, #tpu.memory_space<vmem>>, vector<128x128xbf16>
    %c0_8 = arith.constant 0 : index
    %c0_9 = arith.constant 0 : index
    %4 = vector.load %arg5[%c0_8, %c0_9] : memref<1x128xf32, #tpu.memory_space<vmem>>, vector<1x128xf32>
    %c0_10 = arith.constant 0 : index
    %c0_11 = arith.constant 0 : index
    %5 = vector.load %arg6[%c0_10, %c0_11] : memref<1x128xf32, #tpu.memory_space<vmem>>, vector<1x128xf32>
    %c0_12 = arith.constant 0 : index
    %c0_13 = arith.constant 0 : index
    %6 = vector.load %arg7[%c0_12, %c0_13] : memref<128x128xbf16, #tpu.memory_space<vmem>>, vector<128x128xbf16>
    %cst = arith.constant dense<0.000000e+00> : vector<4x128xf32>
    %7 = vector.multi_reduction <add>, %0, %cst [1] : vector<4x8x128xf32> to vector<4x128xf32>
    %8 = vector.shape_cast %7 : vector<4x128xf32> to vector<4x1x128xf32>
    %cst_14 = arith.constant 8.000000e+00 : f32
    %9 = vector.broadcast %cst_14 : f32 to vector<4x1x128xf32>
    %10 = arith.divf %8, %9 : vector<4x1x128xf32>
    %11 = vector.broadcast %10 : vector<4x1x128xf32> to vector<4x8x128xf32>
    %12 = arith.subf %0, %11 : vector<4x8x128xf32>
    %13 = arith.mulf %12, %12 : vector<4x8x128xf32>
    %cst_15 = arith.constant dense<0.000000e+00> : vector<4x128xf32>
    %14 = vector.multi_reduction <add>, %13, %cst_15 [1] : vector<4x8x128xf32> to vector<4x128xf32>
    %15 = vector.shape_cast %14 : vector<4x128xf32> to vector<4x1x128xf32>
    %cst_16 = arith.constant 8.000000e+00 : f32
    %16 = vector.broadcast %cst_16 : f32 to vector<4x1x128xf32>
    %17 = arith.divf %15, %16 : vector<4x1x128xf32>
    %18 = vector.broadcast %10 : vector<4x1x128xf32> to vector<4x8x128xf32>
    %19 = arith.subf %0, %18 : vector<4x8x128xf32>
    %cst_17 = arith.constant 9.99999974E-6 : f32
    %20 = vector.broadcast %cst_17 : f32 to vector<4x1x128xf32>
    %21 = arith.addf %17, %20 : vector<4x1x128xf32>
    %22 = math.rsqrt %21 : vector<4x1x128xf32>
    %23 = vector.broadcast %22 : vector<4x1x128xf32> to vector<4x8x128xf32>
    %24 = arith.mulf %19, %23 : vector<4x8x128xf32>
    %25 = vector.shape_cast %1 : vector<1x128xf32> to vector<1x1x128xf32>
    %26 = vector.broadcast %25 : vector<1x1x128xf32> to vector<4x8x128xf32>
    %27 = arith.mulf %24, %26 : vector<4x8x128xf32>
    %28 = vector.shape_cast %2 : vector<1x128xf32> to vector<1x1x128xf32>
    %29 = vector.broadcast %28 : vector<1x1x128xf32> to vector<4x8x128xf32>
    %30 = arith.addf %27, %29 : vector<4x8x128xf32>
    %cst_18 = arith.constant 0.000000e+00 : f32
    %31 = vector.broadcast %cst_18 : f32 to vector<4x8x128xf32>
    %32 = arith.maximumf %30, %31 : vector<4x8x128xf32>
    %33 = vector.shape_cast %32 : vector<4x8x128xf32> to vector<32x128xf32>
    %34 = arith.truncf %33 : vector<32x128xf32> to vector<32x128xbf16>
    %cst_19 = arith.constant dense<0.000000e+00> : vector<32x128xf32>
    %35 = tpu.matmul %34, %3, %cst_19 {dimension_numbers = #tpu.dot_dimension_numbers<[1], [0], [0], [1], [0, 0, 1, 1], [], []>} : vector<32x128xbf16>, vector<128x128xbf16>, vector<32x128xf32> -> vector<32x128xf32>
    %36 = vector.shape_cast %35 : vector<32x128xf32> to vector<4x8x128xf32>
    %cst_20 = arith.constant dense<0.000000e+00> : vector<4x128xf32>
    %37 = vector.multi_reduction <add>, %36, %cst_20 [1] : vector<4x8x128xf32> to vector<4x128xf32>
    %38 = vector.shape_cast %37 : vector<4x128xf32> to vector<4x1x128xf32>
    %cst_21 = arith.constant 8.000000e+00 : f32
    %39 = vector.broadcast %cst_21 : f32 to vector<4x1x128xf32>
    %40 = arith.divf %38, %39 : vector<4x1x128xf32>
    %41 = vector.broadcast %40 : vector<4x1x128xf32> to vector<4x8x128xf32>
    %42 = arith.subf %36, %41 : vector<4x8x128xf32>
    %43 = arith.mulf %42, %42 : vector<4x8x128xf32>
    %cst_22 = arith.constant dense<0.000000e+00> : vector<4x128xf32>
    %44 = vector.multi_reduction <add>, %43, %cst_22 [1] : vector<4x8x128xf32> to vector<4x128xf32>
    %45 = vector.shape_cast %44 : vector<4x128xf32> to vector<4x1x128xf32>
    %cst_23 = arith.constant 8.000000e+00 : f32
    %46 = vector.broadcast %cst_23 : f32 to vector<4x1x128xf32>
    %47 = arith.divf %45, %46 : vector<4x1x128xf32>
    %48 = vector.broadcast %40 : vector<4x1x128xf32> to vector<4x8x128xf32>
    %49 = arith.subf %36, %48 : vector<4x8x128xf32>
    %cst_24 = arith.constant 9.99999974E-6 : f32
    %50 = vector.broadcast %cst_24 : f32 to vector<4x1x128xf32>
    %51 = arith.addf %47, %50 : vector<4x1x128xf32>
    %52 = math.rsqrt %51 : vector<4x1x128xf32>
    %53 = vector.broadcast %52 : vector<4x1x128xf32> to vector<4x8x128xf32>
    %54 = arith.mulf %49, %53 : vector<4x8x128xf32>
    %55 = vector.shape_cast %4 : vector<1x128xf32> to vector<1x1x128xf32>
    %56 = vector.broadcast %55 : vector<1x1x128xf32> to vector<4x8x128xf32>
    %57 = arith.mulf %54, %56 : vector<4x8x128xf32>
    %58 = vector.shape_cast %5 : vector<1x128xf32> to vector<1x1x128xf32>
    %59 = vector.broadcast %58 : vector<1x1x128xf32> to vector<4x8x128xf32>
    %60 = arith.addf %57, %59 : vector<4x8x128xf32>
    %cst_25 = arith.constant 0.000000e+00 : f32
    %61 = vector.broadcast %cst_25 : f32 to vector<4x8x128xf32>
    %62 = arith.maximumf %60, %61 : vector<4x8x128xf32>
    %63 = vector.shape_cast %62 : vector<4x8x128xf32> to vector<32x128xf32>
    %64 = arith.truncf %63 : vector<32x128xf32> to vector<32x128xbf16>
    %cst_26 = arith.constant dense<0.000000e+00> : vector<32x128xf32>
    %65 = tpu.matmul %64, %6, %cst_26 {dimension_numbers = #tpu.dot_dimension_numbers<[1], [0], [0], [1], [0, 0, 1, 1], [], []>} : vector<32x128xbf16>, vector<128x128xbf16>, vector<32x128xf32> -> vector<32x128xf32>
    %66 = vector.shape_cast %0 : vector<4x8x128xf32> to vector<32x128xf32>
    %67 = arith.truncf %66 : vector<32x128xf32> to vector<32x128xbf16>
    %c0_27 = arith.constant 0 : index
    %c0_28 = arith.constant 0 : index
    %68 = vector.load %arg9[%c0_27, %c0_28] : memref<128x128xbf16, #tpu.memory_space<vmem>>, vector<128x128xbf16>
    %cst_29 = arith.constant dense<0.000000e+00> : vector<32x128xf32>
    %69 = tpu.matmul %67, %68, %cst_29 {dimension_numbers = #tpu.dot_dimension_numbers<[1], [0], [0], [1], [0, 0, 1, 1], [], []>} : vector<32x128xbf16>, vector<128x128xbf16>, vector<32x128xf32> -> vector<32x128xf32>
    %70 = arith.addf %65, %69 : vector<32x128xf32>
    %c0_30 = arith.constant 0 : index
    %c0_31 = arith.constant 0 : index
    %71 = vector.load %arg8[%c0_30, %c0_31] : memref<1x128xf32, #tpu.memory_space<vmem>>, vector<1x128xf32>
    %72 = vector.broadcast %71 : vector<1x128xf32> to vector<32x128xf32>
    %73 = arith.addf %70, %72 : vector<32x128xf32>
    %cst_32 = arith.constant 0.000000e+00 : f32
    %74 = vector.broadcast %cst_32 : f32 to vector<32x128xf32>
    %75 = arith.maximumf %73, %74 : vector<32x128xf32>
    %76 = vector.shape_cast %75 : vector<32x128xf32> to vector<4x8x128xf32>
    %c0_33 = arith.constant 0 : index
    %c0_34 = arith.constant 0 : index
    %c0_35 = arith.constant 0 : index
    %77 = vector.load %arg10[%c0_33, %c0_34, %c0_35] : memref<4x8x128xf32, #tpu.memory_space<vmem>>, vector<4x8x128xf32>
    tpu.vector_store %arg10[%c0_33, %c0_34, %c0_35], %76 {strides = array<i32>} : memref<4x8x128xf32, #tpu.memory_space<vmem>>, vector<4x8x128xf32>,
    return
  }
  func.func @transform_0(%arg0: i32) -> (i32, i32, i32) {
    %c0_i32 = arith.constant 0 : i32
    %c0_i32_0 = arith.constant 0 : i32
    %c0_i32_1 = arith.constant 0 : i32
    return %arg0, %c0_i32, %c0_i32_0 : i32, i32, i32
  }
  func.func @transform_1(%arg0: i32) -> (i32, i32) {
    %c0_i32 = arith.constant 0 : i32
    %c0_i32_0 = arith.constant 0 : i32
    %c0_i32_1 = arith.constant 0 : i32
    return %c0_i32, %c0_i32_0 : i32, i32
  }
  func.func @transform_2(%arg0: i32) -> (i32, i32) {
    %c0_i32 = arith.constant 0 : i32
    %c0_i32_0 = arith.constant 0 : i32
    %c0_i32_1 = arith.constant 0 : i32
    return %c0_i32, %c0_i32_0 : i32, i32
  }
  func.func @transform_3(%arg0: i32) -> (i32, i32) {
    %c0_i32 = arith.constant 0 : i32
    %c0_i32_0 = arith.constant 0 : i32
    %c0_i32_1 = arith.constant 0 : i32
    return %c0_i32, %c0_i32_0 : i32, i32
  }
  func.func @transform_4(%arg0: i32) -> (i32, i32) {
    %c0_i32 = arith.constant 0 : i32
    %c0_i32_0 = arith.constant 0 : i32
    %c0_i32_1 = arith.constant 0 : i32
    return %c0_i32, %c0_i32_0 : i32, i32
  }
  func.func @transform_5(%arg0: i32) -> (i32, i32) {
    %c0_i32 = arith.constant 0 : i32
    %c0_i32_0 = arith.constant 0 : i32
    %c0_i32_1 = arith.constant 0 : i32
    return %c0_i32, %c0_i32_0 : i32, i32
  }
  func.func @transform_6(%arg0: i32) -> (i32, i32) {
    %c0_i32 = arith.constant 0 : i32
    %c0_i32_0 = arith.constant 0 : i32
    %c0_i32_1 = arith.constant 0 : i32
    return %c0_i32, %c0_i32_0 : i32, i32
  }
  func.func @transform_7(%arg0: i32) -> (i32, i32) {
    %c0_i32 = arith.constant 0 : i32
    %c0_i32_0 = arith.constant 0 : i32
    %c0_i32_1 = arith.constant 0 : i32
    return %c0_i32, %c0_i32_0 : i32, i32
  }
  func.func @transform_8(%arg0: i32) -> (i32, i32) {
    %c0_i32 = arith.constant 0 : i32
    %c0_i32_0 = arith.constant 0 : i32
    %c0_i32_1 = arith.constant 0 : i32
    return %c0_i32, %c0_i32_0 : i32, i32
  }
  func.func @transform_9(%arg0: i32) -> (i32, i32, i32) {
    %c0_i32 = arith.constant 0 : i32
    %c0_i32_0 = arith.constant 0 : i32
    %c0_i32_1 = arith.constant 0 : i32
    return %arg0, %c0_i32, %c0_i32_0 : i32, i32, i32
  }
}

</mosaic_0001>

<llo_original>
// kernel: residual_forward.1
$region0: #{residual_forward.1}
  #allocation0 [shape = 'u32[]', space=smem, size = 0x4, offset = 0x4, fixed_abs, tag = 'smem constant byte address 0x4 - core index']
  #allocation1 [shape = 'u32[144,128]{1,0:T(1,128)}', space=vmem, size = 0x12000, scoped, tag = 'internal scratch']
  %s0 = inlined_call_operand.vmem [shape: f32[8,8,128], index: 0, kind: input, shape index: {}]
  %s1 = inlined_call_operand.vmem [shape: f32[1,128], index: 1, kind: input, shape index: {}]
  %s2 = inlined_call_operand.vmem [shape: f32[1,128], index: 2, kind: input, shape index: {}]
  %s3 = inlined_call_operand.vmem [shape: bf16[128,128], index: 3, kind: input, shape index: {}]
  %s4 = inlined_call_operand.vmem [shape: f32[1,128], index: 4, kind: input, shape index: {}]
  %s5 = inlined_call_operand.vmem [shape: f32[1,128], index: 5, kind: input, shape index: {}]
  %s6 = inlined_call_operand.vmem [shape: bf16[128,128], index: 6, kind: input, shape index: {}]
  %s7 = inlined_call_operand.vmem [shape: f32[1,128], index: 7, kind: input, shape index: {}]
  %s8 = inlined_call_operand.vmem [shape: bf16[128,128], index: 8, kind: input, shape index: {}]
  %s9 = inlined_call_operand.hbm [shape: f32[8,8,128], index: 9, kind: output, shape index: {}]
  %s10 = sld [smem:[#allocation0]]
  $region69: #{residual_forward.1} parent=0
    _
  %s12 = ssub.s32 1, %s10
  %s13 = scalar_select 0, %s12, %s10
  $region1: #{residual_forward.1} parent=0
    #allocation2 [shape = 'u8[32768]{0}', space=vmem, size = 0x8000, scoped, tag = 'output window, operand 0']
    #allocation3 [shape = 's32[2]{0}', space=sflag, size = 0x8, scoped, tag = 'scoped memory for residual_forward.1']
    %14 = vsyncpa [#allocation3], 0
    %s15 = scalar_lea.sflag [#allocation3], 1
    %16 = vsyncpa %s15, 0
    loop: start=0, step=1, limit=4
    $region2: #{residual_forward.1} parent=1 // loop_pre_header
      _
    $region3: #{residual_forward.1} parent=1 // loop_header
      %s18 = sphi 0, %s22
      %p19 = scmp.ge.s32.totalorder %s18, 4
      %s28 = sphi 0, %s30
      %s31 = sphi 0, %s28
      %s32 = sphi 0, %s31
      %s48 = sphi 0, %s32
      %s52 = sphi 0, %s52
      %s54 = sphi 0, %s52
      %s55 = sphi 0, %s54
      %s69 = sphi 0, %s55
      %s73 = sphi 0, %s73
      %s75 = sphi 0, %s73
      %s76 = sphi 0, %s75
      %s90 = sphi 0, %s76
      %s94 = sphi 0, %s94
      %s96 = sphi 0, %s94
      %s97 = sphi 0, %s96
      %s111 = sphi 0, %s97
      %s115 = sphi 0, %s115
      %s117 = sphi 0, %s115
      %s118 = sphi 0, %s117
      %s132 = sphi 0, %s118
      %s136 = sphi 0, %s136
      %s138 = sphi 0, %s136
      %s139 = sphi 0, %s138
      %s153 = sphi 0, %s139
      %s157 = sphi 0, %s157
      %s159 = sphi 0, %s157
      %s160 = sphi 0, %s159
      %s174 = sphi 0, %s160
      %s178 = sphi 0, %s178
      %s180 = sphi 0, %s178
      %s181 = sphi 0, %s180
      %s195 = sphi 0, %s181
      %s199 = sphi 0, %s199
      %s201 = sphi 0, %s199
      %s202 = sphi 0, %s201
      %s216 = sphi 0, %s202
      %s222 = sphi 0, %s224
      %s225 = sphi 0, %s222
      %s226 = sphi 0, %s225
      %s242 = sphi 0, %s226
    $region4: #{residual_forward.1} parent=1 // loop_header_branch
      %21 = sbr.rel (%p19) target = $region8
    $region5: #{residual_forward.1} parent=1 // loop_body
      %s23 = ssub.s32 %s18, 1
      %s24 = ssub.s32 %s18, 2
      %s25 = sadd.s32 %s18, 1
      %s26 = ssub.s32 %s18, %s25
      %p27 = scmp.eq.s32.totalorder %s26, 0
      %s29 = sadd.s32 %s28, 1
      %s30 = scalar_select %p27, %s28, %s29
      %p33 = pneg %p27
      %p34 = scmp.eq.s32.totalorder %s18, 1
      %p35 = por %p33, %p34
      %p36 = scmp.ne.s32.totalorder %s28, %s31
      %p37 = scmp.eq.s32.totalorder %s18, 0
      %p38 = por %p36, %p37
      %p39 = scmp.ne.s32.totalorder %s28, %s31
      %p40 = scmp.eq.s32.totalorder %s23, 1
      %p41 = por %p39, %p40
      %p42 = scmp.ne.s32.totalorder %s31, %s32
      %p43 = scmp.eq.s32.totalorder %s23, 0
      %p44 = por %p42, %p43
      %p45 = scmp.ne.s32.totalorder %s31, %s32
      %p46 = scmp.eq.s32.totalorder %s24, 1
      %p47 = por %p45, %p46
      %p49 = scmp.ne.s32.totalorder %s32, %s48
      %p50 = scmp.eq.s32.totalorder %s24, 0
      %p51 = por %p49, %p50
      %s53 = sadd.s32 %s52, 1
      %p56 = scmp.eq.s32.totalorder %s18, 1
      %p57 = scmp.ne.s32.totalorder %s52, %s54
      %p58 = scmp.eq.s32.totalorder %s18, 0
      %p59 = por %p57, %p58
      %p60 = scmp.ne.s32.totalorder %s52, %s54
      %p61 = scmp.eq.s32.totalorder %s23, 1
      %p62 = por %p60, %p61
      %p63 = scmp.ne.s32.totalorder %s54, %s55
      %p64 = scmp.eq.s32.totalorder %s23, 0
      %p65 = por %p63, %p64
      %p66 = scmp.ne.s32.totalorder %s54, %s55
      %p67 = scmp.eq.s32.totalorder %s24, 1
      %p68 = por %p66, %p67
      %p70 = scmp.ne.s32.totalorder %s55, %s69
      %p71 = scmp.eq.s32.totalorder %s24, 0
      %p72 = por %p70, %p71
      %s74 = sadd.s32 %s73, 1
      %p77 = scmp.eq.s32.totalorder %s18, 1
      %p78 = scmp.ne.s32.totalorder %s73, %s75
      %p79 = scmp.eq.s32.totalorder %s18, 0
      %p80 = por %p78, %p79
      %p81 = scmp.ne.s32.totalorder %s73, %s75
      %p82 = scmp.eq.s32.totalorder %s23, 1
      %p83 = por %p81, %p82
      %p84 = scmp.ne.s32.totalorder %s75, %s76
      %p85 = scmp.eq.s32.totalorder %s23, 0
      %p86 = por %p84, %p85
      %p87 = scmp.ne.s32.totalorder %s75, %s76
      %p88 = scmp.eq.s32.totalorder %s24, 1
      %p89 = por %p87, %p88
      %p91 = scmp.ne.s32.totalorder %s76, %s90
      %p92 = scmp.eq.s32.totalorder %s24, 0
      %p93 = por %p91, %p92
      %s95 = sadd.s32 %s94, 1
      %p98 = scmp.eq.s32.totalorder %s18, 1
      %p99 = scmp.ne.s32.totalorder %s94, %s96
      %p100 = scmp.eq.s32.totalorder %s18, 0
      %p101 = por %p99, %p100
      %p102 = scmp.ne.s32.totalorder %s94, %s96
      %p103 = scmp.eq.s32.totalorder %s23, 1
      %p104 = por %p102, %p103
      %p105 = scmp.ne.s32.totalorder %s96, %s97
      %p106 = scmp.eq.s32.totalorder %s23, 0
      %p107 = por %p105, %p106
      %p108 = scmp.ne.s32.totalorder %s96, %s97
      %p109 = scmp.eq.s32.totalorder %s24, 1
      %p110 = por %p108, %p109
      %p112 = scmp.ne.s32.totalorder %s97, %s111
      %p113 = scmp.eq.s32.totalorder %s24, 0
      %p114 = por %p112, %p113
      %s116 = sadd.s32 %s115, 1
      %p119 = scmp.eq.s32.totalorder %s18, 1
      %p120 = scmp.ne.s32.totalorder %s115, %s117
      %p121 = scmp.eq.s32.totalorder %s18, 0
      %p122 = por %p120, %p121
      %p123 = scmp.ne.s32.totalorder %s115, %s117
      %p124 = scmp.eq.s32.totalorder %s23, 1
      %p125 = por %p123, %p124
      %p126 = scmp.ne.s32.totalorder %s117, %s118
      %p127 = scmp.eq.s32.totalorder %s23, 0
      %p128 = por %p126, %p127
      %p129 = scmp.ne.s32.totalorder %s117, %s118
      %p130 = scmp.eq.s32.totalorder %s24, 1
      %p131 = por %p129, %p130
      %p133 = scmp.ne.s32.totalorder %s118, %s132
      %p134 = scmp.eq.s32.totalorder %s24, 0
      %p135 = por %p133, %p134
      %s137 = sadd.s32 %s136, 1
      %p140 = scmp.eq.s32.totalorder %s18, 1
      %p141 = scmp.ne.s32.totalorder %s136, %s138
      %p142 = scmp.eq.s32.totalorder %s18, 0
      %p143 = por %p141, %p142
      %p144 = scmp.ne.s32.totalorder %s136, %s138
      %p145 = scmp.eq.s32.totalorder %s23, 1
      %p146 = por %p144, %p145
      %p147 = scmp.ne.s32.totalorder %s138, %s139
      %p148 = scmp.eq.s32.totalorder %s23, 0
      %p149 = por %p147, %p148
      %p150 = scmp.ne.s32.totalorder %s138, %s139
      %p151 = scmp.eq.s32.totalorder %s24, 1
      %p152 = por %p150, %p151
      %p154 = scmp.ne.s32.totalorder %s139, %s153
      %p155 = scmp.eq.s32.totalorder %s24, 0
      %p156 = por %p154, %p155
      %s158 = sadd.s32 %s157, 1
      %p161 = scmp.eq.s32.totalorder %s18, 1
      %p162 = scmp.ne.s32.totalorder %s157, %s159
      %p163 = scmp.eq.s32.totalorder %s18, 0
      %p164 = por %p162, %p163
      %p165 = scmp.ne.s32.totalorder %s157, %s159
      %p166 = scmp.eq.s32.totalorder %s23, 1
      %p167 = por %p165, %p166
      %p168 = scmp.ne.s32.totalorder %s159, %s160
      %p169 = scmp.eq.s32.totalorder %s23, 0
      %p170 = por %p168, %p169
      %p171 = scmp.ne.s32.totalorder %s159, %s160
      %p172 = scmp.eq.s32.totalorder %s24, 1
      %p173 = por %p171, %p172
      %p175 = scmp.ne.s32.totalorder %s160, %s174
      %p176 = scmp.eq.s32.totalorder %s24, 0
      %p177 = por %p175, %p176
      %s179 = sadd.s32 %s178, 1
      %p182 = scmp.eq.s32.totalorder %s18, 1
      %p183 = scmp.ne.s32.totalorder %s178, %s180
      %p184 = scmp.eq.s32.totalorder %s18, 0
      %p185 = por %p183, %p184
      %p186 = scmp.ne.s32.totalorder %s178, %s180
      %p187 = scmp.eq.s32.totalorder %s23, 1
      %p188 = por %p186, %p187
      %p189 = scmp.ne.s32.totalorder %s180, %s181
      %p190 = scmp.eq.s32.totalorder %s23, 0
      %p191 = por %p189, %p190
      %p192 = scmp.ne.s32.totalorder %s180, %s181
      %p193 = scmp.eq.s32.totalorder %s24, 1
      %p194 = por %p192, %p193
      %p196 = scmp.ne.s32.totalorder %s181, %s195
      %p197 = scmp.eq.s32.totalorder %s24, 0
      %p198 = por %p196, %p197
      %s200 = sadd.s32 %s199, 1
      %p203 = scmp.eq.s32.totalorder %s18, 1
      %p204 = scmp.ne.s32.totalorder %s199, %s201
      %p205 = scmp.eq.s32.totalorder %s18, 0
      %p206 = por %p204, %p205
      %p207 = scmp.ne.s32.totalorder %s199, %s201
      %p208 = scmp.eq.s32.totalorder %s23, 1
      %p209 = por %p207, %p208
      %p210 = scmp.ne.s32.totalorder %s201, %s202
      %p211 = scmp.eq.s32.totalorder %s23, 0
      %p212 = por %p210, %p211
      %p213 = scmp.ne.s32.totalorder %s201, %s202
      %p214 = scmp.eq.s32.totalorder %s24, 1
      %p215 = por %p213, %p214
      %p217 = scmp.ne.s32.totalorder %s202, %s216
      %p218 = scmp.eq.s32.totalorder %s24, 0
      %p219 = por %p217, %p218
      %s220 = ssub.s32 %s18, %s25
      %p221 = scmp.eq.s32.totalorder %s220, 0
      %s223 = sadd.s32 %s222, 1
      %s224 = scalar_select %p221, %s222, %s223
      %p227 = pneg %p221
      %p228 = scmp.eq.s32.totalorder %s18, 1
      %p229 = por %p227, %p228
      %p230 = scmp.ne.s32.totalorder %s222, %s225
      %p231 = scmp.eq.s32.totalorder %s18, 0
      %p232 = por %p230, %p231
      %p233 = scmp.ne.s32.totalorder %s222, %s225
      %p234 = scmp.eq.s32.totalorder %s23, 1
      %p235 = por %p233, %p234
      %p236 = scmp.ne.s32.totalorder %s225, %s226
      %p237 = scmp.eq.s32.totalorder %s23, 0
      %p238 = por %p236, %p237
      %p239 = scmp.ne.s32.totalorder %s225, %s226
      %p240 = scmp.eq.s32.totalorder %s24, 1
      %p241 = por %p239, %p240
      %p243 = scmp.ne.s32.totalorder %s226, %s242
      %p244 = scmp.eq.s32.totalorder %s24, 0
      %p245 = por %p243, %p244
      %p246 = scmp.le.s32.totalorder 1, %s18
      %p247 = scmp.lt.s32.totalorder %s18, 3
      %p248 = pnand %p246, %p247
      %p249 = pneg %p248
      // Predicated region
      $region9: #{residual_forward.1} parent=5 // pred_check
        _
      $region10: #{residual_forward.1} parent=5 // pred_check_branch
        %251 = sbr.rel (%p248) target = $region12
      $region11: #{residual_forward.1} parent=5 // pred_region
        %s252 = ssub.s32 %s18, 1
        // Predicated region
        $region13: #{residual_forward.1} parent=11 // pred_check
          %p253 = pneg %p65
        $region14: #{residual_forward.1} parent=11 // pred_check_branch
          %255 = sbr.rel (%p253) target = $region16
        $region15: #{residual_forward.1} parent=11 // pred_region
          _
        $region16: #{residual_forward.1} parent=11 // pred_fallthru
          _
        // Predicated region
        $region17: #{residual_forward.1} parent=11 // pred_check
          %p256 = pneg %p86
        $region18: #{residual_forward.1} parent=11 // pred_check_branch
          %258 = sbr.rel (%p256) target = $region20
        $region19: #{residual_forward.1} parent=11 // pred_region
          _
        $region20: #{residual_forward.1} parent=11 // pred_fallthru
          _
        // Predicated region
        $region21: #{residual_forward.1} parent=11 // pred_check
          %p259 = pneg %p107
        $region22: #{residual_forward.1} parent=11 // pred_check_branch
          %261 = sbr.rel (%p259) target = $region24
        $region23: #{residual_forward.1} parent=11 // pred_region
          _
        $region24: #{residual_forward.1} parent=11 // pred_fallthru
          _
        // Predicated region
        $region25: #{residual_forward.1} parent=11 // pred_check
          %p262 = pneg %p128
        $region26: #{residual_forward.1} parent=11 // pred_check_branch
          %264 = sbr.rel (%p262) target = $region28
        $region27: #{residual_forward.1} parent=11 // pred_region
          _
        $region28: #{residual_forward.1} parent=11 // pred_fallthru
          _
        // Predicated region
        $region29: #{residual_forward.1} parent=11 // pred_check
          %p265 = pneg %p149
        $region30: #{residual_forward.1} parent=11 // pred_check_branch
          %267 = sbr.rel (%p265) target = $region32
        $region31: #{residual_forward.1} parent=11 // pred_region
          _
        $region32: #{residual_forward.1} parent=11 // pred_fallthru
          _
        // Predicated region
        $region33: #{residual_forward.1} parent=11 // pred_check
          %p268 = pneg %p170
        $region34: #{residual_forward.1} parent=11 // pred_check_branch
          %270 = sbr.rel (%p268) target = $region36
        $region35: #{residual_forward.1} parent=11 // pred_region
          _
        $region36: #{residual_forward.1} parent=11 // pred_fallthru
          _
        // Predicated region
        $region37: #{residual_forward.1} parent=11 // pred_check
          %p271 = pneg %p191
        $region38: #{residual_forward.1} parent=11 // pred_check_branch
          %273 = sbr.rel (%p271) target = $region40
        $region39: #{residual_forward.1} parent=11 // pred_region
          _
        $region40: #{residual_forward.1} parent=11 // pred_fallthru
          _
        // Predicated region
        $region41: #{residual_forward.1} parent=11 // pred_check
          %p274 = pneg %p212
        $region42: #{residual_forward.1} parent=11 // pred_check_branch
          %276 = sbr.rel (%p274) target = $region44
        $region43: #{residual_forward.1} parent=11 // pred_region
          _
        $region44: #{residual_forward.1} parent=11 // pred_fallthru
          _
      $region12: #{residual_forward.1} parent=5 // pred_fallthru
        _
      %p277 = scmp.lt.s32.totalorder %s18, 2
      // Predicated region
      $region45: #{residual_forward.1} parent=5 // pred_check
        %p278 = pneg %p277
      $region46: #{residual_forward.1} parent=5 // pred_check_branch
        %280 = sbr.rel (%p278) target = $region48
      $region47: #{residual_forward.1} parent=5 // pred_region
        // Predicated region
        $region49: #{residual_forward.1} parent=47 // pred_check
          %p281 = pneg %p38
        $region50: #{residual_forward.1} parent=47 // pred_check_branch
          %283 = sbr.rel (%p281) target = $region52
        $region51: #{residual_forward.1} parent=47 // pred_region
          %s284 = smul.u32 4, %s18
          %p285 = scmp.lt.s32.totalorder %s284, 7
          %s286 = scalar_select %p285, %s284, 7
          %s287 = smul.addr %s286, 8
          %s288 = scalar_lea.vmem %s0, %s287
          %s289 = smul.u32 4, %s18
        $region52: #{residual_forward.1} parent=47 // pred_fallthru
          _
      $region48: #{residual_forward.1} parent=5 // pred_fallthru
        _
      %p290 = scmp.le.s32.totalorder 1, %s18
      %p291 = scmp.lt.s32.totalorder %s18, 3
      %p292 = pnand %p290, %p291
      %p293 = pneg %p292
      // Predicated region
      $region53: #{residual_forward.1} parent=5 // pred_check
        _
      $region54: #{residual_forward.1} parent=5 // pred_check_branch
        %295 = sbr.rel (%p292) target = $region56
      $region55: #{residual_forward.1} parent=5 // pred_region
        %s296 = ssub.s32 %s18, 1
        %s297 = smul.u32 4, %s23
        %p298 = scmp.lt.s32.totalorder %s297, 7
        %s299 = scalar_select %p298, %s297, 7
        %s300 = smul.addr %s299, 8
        %s301 = scalar_lea.vmem %s0, %s300
        %p302 = pneg %p44
        %p303 = pneg %p41
        %p304 = pneg %p65
        %p305 = pneg %p62
        %p306 = pneg %p86
        %p307 = pneg %p83
        %p308 = pneg %p107
        %p309 = pneg %p104
        %p310 = pneg %p128
        %p311 = pneg %p125
        %p312 = pneg %p149
        %p313 = pneg %p146
        %p314 = pneg %p170
        %p315 = pneg %p167
        %p316 = pneg %p191
        %p317 = pneg %p188
        %p318 = pneg %p212
        %p319 = pneg %p209
        %p320 = pneg %p238
        %p321 = pneg %p235
        %s322 = sand.u32 %s225, 1
        %s323 = scalar_lea.sflag [#allocation3], %s322
        %s324 = sand.u32 %s225, 1
        %s325 = smul.addr %s324, 32
        %s326 = scalar_lea.vmem [#allocation2], %s325
        %s327 = smul.u32 4, %s23
        %p328 = scmp.lt.s32.totalorder %s327, 7
        %s329 = scalar_select %p328, %s327, 7
        %s330 = smul.addr %s329, 8
        %s331 = scalar_lea.vmem %s0, %s330
        %s332 = smul.u32 4, %s23
        %s333 = smul.u32 4, %s23
        %v335 = vld [vmem:[%s331] sm:$0xff]
        %v336 = vld [vmem:[%s331 + $0x8] sm:$0xff]
        %v337 = vld [vmem:[%s331 + $0x10] sm:$0xff]
        %v338 = vld [vmem:[%s331 + $0x18] sm:$0xff]
        %v339 = vld [vmem:[%s1] sm:$0x1]
        %v340 = vld [vmem:[%s2] sm:$0x1]
        %v341 = vld [vmem:[%s3] sm:$0xf]
        %v342 = vld [vmem:[%s3 + $0x4] sm:$0xf]
        %v343 = vld [vmem:[%s3 + $0x8] sm:$0xf]
        %v344 = vld [vmem:[%s3 + $0xc] sm:$0xf]
        %v345 = vld [vmem:[%s3 + $0x10] sm:$0xf]
        %v346 = vld [vmem:[%s3 + $0x14] sm:$0xf]
        %v347 = vld [vmem:[%s3 + $0x18] sm:$0xf]
        %v348 = vld [vmem:[%s3 + $0x1c] sm:$0xf]
        %v349 = vld [vmem:[%s3 + $0x20] sm:$0xf]
        %v350 = vld [vmem:[%s3 + $0x24] sm:$0xf]
        %v351 = vld [vmem:[%s3 + $0x28] sm:$0xf]
        %v352 = vld [vmem:[%s3 + $0x2c] sm:$0xf]
        %v353 = vld [vmem:[%s3 + $0x30] sm:$0xf]
        %v354 = vld [vmem:[%s3 + $0x34] sm:$0xf]
        %v355 = vld [vmem:[%s3 + $0x38] sm:$0xf]
        %v356 = vld [vmem:[%s3 + $0x3c] sm:$0xf]
        %v357 = vld [vmem:[%s4] sm:$0x1]
        %v358 = vld [vmem:[%s5] sm:$0x1]
        %v359 = vld [vmem:[%s6] sm:$0xf]
        %v360 = vld [vmem:[%s6 + $0x4] sm:$0xf]
        %v361 = vld [vmem:[%s6 + $0x8] sm:$0xf]
        %v362 = vld [vmem:[%s6 + $0xc] sm:$0xf]
        %v363 = vld [vmem:[%s6 + $0x10] sm:$0xf]
        %v364 = vld [vmem:[%s6 + $0x14] sm:$0xf]
        %v365 = vld [vmem:[%s6 + $0x18] sm:$0xf]
        %v366 = vld [vmem:[%s6 + $0x1c] sm:$0xf]
        %v367 = vld [vmem:[%s6 + $0x20] sm:$0xf]
        %v368 = vld [vmem:[%s6 + $0x24] sm:$0xf]
        %v369 = vld [vmem:[%s6 + $0x28] sm:$0xf]
        %v370 = vld [vmem:[%s6 + $0x2c] sm:$0xf]
        %v371 = vld [vmem:[%s6 + $0x30] sm:$0xf]
        %v372 = vld [vmem:[%s6 + $0x34] sm:$0xf]
        %v373 = vld [vmem:[%s6 + $0x38] sm:$0xf]
        %v374 = vld [vmem:[%s6 + $0x3c] sm:$0xf]
        %v375 = vrot.slane %v335, 4
        %v376 = vadd.f32 %v335, %v375
        %v377 = vrot.slane %v376, 2
        %v378 = vadd.f32 %v376, %v377
        %v379 = vrot.slane %v378, 1
        %v380 = vadd.f32 %v378, %v379
        %v381 = vrot.slane %v336, 4
        %v382 = vadd.f32 %v336, %v381
        %v383 = vrot.slane %v382, 2
        %v384 = vadd.f32 %v382, %v383
        %v385 = vrot.slane %v384, 1
        %v386 = vadd.f32 %v384, %v385
        %v387 = vrot.slane %v337, 4
        %v388 = vadd.f32 %v337, %v387
        %v389 = vrot.slane %v388, 2
        %v390 = vadd.f32 %v388, %v389
        %v391 = vrot.slane %v390, 1
        %v392 = vadd.f32 %v390, %v391
        %v393 = vrot.slane %v338, 4
        %v394 = vadd.f32 %v338, %v393
        %v395 = vrot.slane %v394, 2
        %v396 = vadd.f32 %v394, %v395
        %v397 = vrot.slane %v396, 1
        %v398 = vadd.f32 %v396, %v397
        %v399 = vrcp.pop 8.0
        %v400 = vmul.f32 %v380, %v399
        %v401 = vmul.f32 %v386, %v399
        %v402 = vmul.f32 %v392, %v399
        %v403 = vmul.f32 %v398, %v399
        %v404 = vsub.f32 %v335, %v400
        %v405 = vsub.f32 %v336, %v401
        %v406 = vsub.f32 %v337, %v402
        %v407 = vsub.f32 %v338, %v403
        %v408 = vmul.f32 %v404, %v404
        %v409 = vmul.f32 %v405, %v405
        %v410 = vmul.f32 %v406, %v406
        %v411 = vmul.f32 %v407, %v407
        %v412 = vrot.slane %v408, 4
        %v413 = vadd.f32 %v408, %v412
        %v414 = vrot.slane %v413, 2
        %v415 = vadd.f32 %v413, %v414
        %v416 = vrot.slane %v415, 1
        %v417 = vadd.f32 %v415, %v416
        %v418 = vrot.slane %v409, 4
        %v419 = vadd.f32 %v409, %v418
        %v420 = vrot.slane %v419, 2
        %v421 = vadd.f32 %v419, %v420
        %v422 = vrot.slane %v421, 1
        %v423 = vadd.f32 %v421, %v422
        %v424 = vrot.slane %v410, 4
        %v425 = vadd.f32 %v410, %v424
        %v426 = vrot.slane %v425, 2
        %v427 = vadd.f32 %v425, %v426
        %v428 = vrot.slane %v427, 1
        %v429 = vadd.f32 %v427, %v428
        %v430 = vrot.slane %v411, 4
        %v431 = vadd.f32 %v411, %v430
        %v432 = vrot.slane %v431, 2
        %v433 = vadd.f32 %v431, %v432
        %v434 = vrot.slane %v433, 1
        %v435 = vadd.f32 %v433, %v434
        %v436 = vmul.f32 %v417, %v399
        %v437 = vmul.f32 %v423, %v399
        %v438 = vmul.f32 %v429, %v399
        %v439 = vmul.f32 %v435, %v399
        %v440 = vadd.f32 %v436, 1e-05
        %v441 = vadd.f32 %v437, 1e-05
        %v442 = vadd.f32 %v438, 1e-05
        %v443 = vadd.f32 %v439, 1e-05
        %v444 = vrsqrt.pop %v440
        %v445 = vrsqrt.pop %v441
        %v446 = vrsqrt.pop %v442
        %v447 = vrsqrt.pop %v443
        %v448 = vmul.f32 %v404, %v444
        %v449 = vmul.f32 %v405, %v445
        %v450 = vmul.f32 %v406, %v446
        %v451 = vmul.f32 %v407, %v447
        %v453 = vlaneseq
        %v454 = vshrl.u32 %v453, 7
        %v455 = vsub.s32 0, %v454
        %v456 = vrot.slane %v339, %v455
        %v458 = vmul.f32 %v448, %v456
        %v459 = vmul.f32 %v449, %v456
        %v460 = vmul.f32 %v450, %v456
        %v461 = vmul.f32 %v451, %v456
        %v463 = vlaneseq
        %v464 = vshrl.u32 %v463, 7
        %v465 = vsub.s32 0, %v464
        %v466 = vrot.slane %v340, %v465
        %v468 = vadd.f32 %v458, %v466
        %v469 = vadd.f32 %v459, %v466
        %v470 = vadd.f32 %v460, %v466
        %v471 = vadd.f32 %v461, %v466
        %v472 = vmax.f32 %v468, 0.0
        %v473 = vmax.f32 %v469, 0.0
        %v474 = vmax.f32 %v470, 0.0
        %v475 = vmax.f32 %v471, 0.0
        %v476 = vpack.c.bf16 %v473, %v472
        %v477 = vpack.c.bf16 %v475, %v474
        %v494 = vunpack.c.l.b16 %v341
        %v495 = vunpack.c.l.b16 %v342
        %v496 = vunpack.c.l.b16 %v343
        %v497 = vunpack.c.l.b16 %v344
        %v498 = vunpack.c.l.b16 %v345
        %v499 = vunpack.c.l.b16 %v346
        %v500 = vunpack.c.l.b16 %v347
        %v501 = vunpack.c.l.b16 %v348
        %v502 = vunpack.c.l.b16 %v349
        %v503 = vunpack.c.l.b16 %v350
        %v504 = vunpack.c.l.b16 %v351
        %v505 = vunpack.c.l.b16 %v352
        %v506 = vunpack.c.l.b16 %v353
        %v507 = vunpack.c.l.b16 %v354
        %v508 = vunpack.c.l.b16 %v355
        %v509 = vunpack.c.l.b16 %v356
        %v510 = vpack.c.b16 %v495, %v494
        %v511 = vpack.c.b16 %v497, %v496
        %v512 = vpack.c.b16 %v499, %v498
        %v513 = vpack.c.b16 %v501, %v500
        %v514 = vpack.c.b16 %v503, %v502
        %v515 = vpack.c.b16 %v505, %v504
        %v516 = vpack.c.b16 %v507, %v506
        %v517 = vpack.c.b16 %v509, %v508
        %526 = vmatprep.subr.bf16.mxu0 0
        %527 = vmatpush1.bf16.msra.mxu0 %v510
        %528 = vmatprep.subr.bf16.mxu0 0
        %529 = vmatpush1.bf16.msra.mxu0 %v511
        %530 = vmatprep.subr.bf16.mxu0 0
        %531 = vmatpush1.bf16.msra.mxu0 %v512
        %532 = vmatprep.subr.bf16.mxu0 0
        %533 = vmatpush1.bf16.msra.mxu0 %v513
        %534 = vmatprep.subr.bf16.mxu0 0
        %535 = vmatpush1.bf16.msra.mxu0 %v514
        %536 = vmatprep.subr.bf16.mxu0 0
        %537 = vmatpush1.bf16.msra.mxu0 %v515
        %538 = vmatprep.subr.bf16.mxu0 0
        %539 = vmatpush1.bf16.msra.mxu0 %v516
        %540 = vmatprep.subr.bf16.mxu0 0
        %541 = vmatpush1.bf16.msra.mxu0 %v517
        %542 = vmatprep.subr.bf16.mxu0 0
        %543 = vmatpush1.bf16.msra.mxu0 0
        %544 = vmatprep.subr.bf16.mxu0 0
        %545 = vmatpush1.bf16.msra.mxu0 0
        %546 = vmatprep.subr.bf16.mxu0 0
        %547 = vmatpush1.bf16.msra.mxu0 0
        %548 = vmatprep.subr.bf16.mxu0 0
        %549 = vmatpush1.bf16.msra.mxu0 0
        %550 = vmatprep.subr.bf16.mxu0 0
        %551 = vmatpush1.bf16.msra.mxu0 0
        %552 = vmatprep.subr.bf16.mxu0 0
        %553 = vmatpush1.bf16.msra.mxu0 0
        %554 = vmatprep.subr.bf16.mxu0 0
        %555 = vmatpush1.bf16.msra.mxu0 0
        %556 = vmatprep.subr.bf16.mxu0 0
        %557 = vmatpush1.bf16.msra.mxu0 0
        %558 = vmatprep.mubr.bf16.mxu0 0
        %559 = vmatmul.mubr.bf16.gmra.mrb[0].mxu0 %v476
        %v560 = vpop.f32.mrb[0].mxu0
        %v561 = vadd.f32 0.0, %v560
        %v562 = vpop.f32.mrb[0].mxu0
        %v563 = vpop.f32.mrb[0].mxu0
        %v564 = vadd.f32 0.0, %v563
        %v565 = vpop.f32.mrb[0].mxu0
        %566 = vmatprep.mubr.bf16.mxu0 0
        %567 = vmatmul.mubr.bf16.gmra.mrb[0].mxu0 %v477
        %v568 = vpop.f32.mrb[0].mxu0
        %v569 = vadd.f32 0.0, %v568
        %v570 = vpop.f32.mrb[0].mxu0
        %v571 = vpop.f32.mrb[0].mxu0
        %v572 = vadd.f32 0.0, %v571
        %v573 = vpop.f32.mrb[0].mxu0
        %574 = vdwg.mxu0
        %v575 = vrot.slane %v561, 4
        %v576 = vadd.f32 %v561, %v575
        %v577 = vrot.slane %v576, 2
        %v578 = vadd.f32 %v576, %v577
        %v579 = vrot.slane %v578, 1
        %v580 = vadd.f32 %v578, %v579
        %v581 = vrot.slane %v564, 4
        %v582 = vadd.f32 %v564, %v581
        %v583 = vrot.slane %v582, 2
        %v584 = vadd.f32 %v582, %v583
        %v585 = vrot.slane %v584, 1
        %v586 = vadd.f32 %v584, %v585
        %v587 = vrot.slane %v569, 4
        %v588 = vadd.f32 %v569, %v587
        %v589 = vrot.slane %v588, 2
        %v590 = vadd.f32 %v588, %v589
        %v591 = vrot.slane %v590, 1
        %v592 = vadd.f32 %v590, %v591
        %v593 = vrot.slane %v572, 4
        %v594 = vadd.f32 %v572, %v593
        %v595 = vrot.slane %v594, 2
        %v596 = vadd.f32 %v594, %v595
        %v597 = vrot.slane %v596, 1
        %v598 = vadd.f32 %v596, %v597
        %v599 = vmul.f32 %v580, %v399
        %v600 = vmul.f32 %v586, %v399
        %v601 = vmul.f32 %v592, %v399
        %v602 = vmul.f32 %v598, %v399
        %v603 = vsub.f32 %v561, %v599
        %v604 = vsub.f32 %v564, %v600
        %v605 = vsub.f32 %v569, %v601
        %v606 = vsub.f32 %v572, %v602
        %v607 = vmul.f32 %v603, %v603
        %v608 = vmul.f32 %v604, %v604
        %v609 = vmul.f32 %v605, %v605
        %v610 = vmul.f32 %v606, %v606
        %v611 = vrot.slane %v607, 4
        %v612 = vadd.f32 %v607, %v611
        %v613 = vrot.slane %v612, 2
        %v614 = vadd.f32 %v612, %v613
        %v615 = vrot.slane %v614, 1
        %v616 = vadd.f32 %v614, %v615
        %v617 = vrot.slane %v608, 4
        %v618 = vadd.f32 %v608, %v617
        %v619 = vrot.slane %v618, 2
        %v620 = vadd.f32 %v618, %v619
        %v621 = vrot.slane %v620, 1
        %v622 = vadd.f32 %v620, %v621
        %v623 = vrot.slane %v609, 4
        %v624 = vadd.f32 %v609, %v623
        %v625 = vrot.slane %v624, 2
        %v626 = vadd.f32 %v624, %v625
        %v627 = vrot.slane %v626, 1
        %v628 = vadd.f32 %v626, %v627
        %v629 = vrot.slane %v610, 4
        %v630 = vadd.f32 %v610, %v629
        %v631 = vrot.slane %v630, 2
        %v632 = vadd.f32 %v630, %v631
        %v633 = vrot.slane %v632, 1
        %v634 = vadd.f32 %v632, %v633
        %v635 = vmul.f32 %v616, %v399
        %v636 = vmul.f32 %v622, %v399
        %v637 = vmul.f32 %v628, %v399
        %v638 = vmul.f32 %v634, %v399
        %v639 = vadd.f32 %v635, 1e-05
        %v640 = vadd.f32 %v636, 1e-05
        %v641 = vadd.f32 %v637, 1e-05
        %v642 = vadd.f32 %v638, 1e-05
        %v643 = vrsqrt.pop %v639
        %v644 = vrsqrt.pop %v640
        %v645 = vrsqrt.pop %v641
        %v646 = vrsqrt.pop %v642
        %v647 = vmul.f32 %v603, %v643
        %v648 = vmul.f32 %v604, %v644
        %v649 = vmul.f32 %v605, %v645
        %v650 = vmul.f32 %v606, %v646
        %v652 = vlaneseq
        %v653 = vshrl.u32 %v652, 7
        %v654 = vsub.s32 0, %v653
        %v655 = vrot.slane %v357, %v654
        %v657 = vmul.f32 %v647, %v655
        %v658 = vmul.f32 %v648, %v655
        %v659 = vmul.f32 %v649, %v655
        %v660 = vmul.f32 %v650, %v655
        %v662 = vlaneseq
        %v663 = vshrl.u32 %v662, 7
        %v664 = vsub.s32 0, %v663
        %v665 = vrot.slane %v358, %v664
        %v667 = vadd.f32 %v657, %v665
        %v668 = vadd.f32 %v658, %v665
        %v669 = vadd.f32 %v659, %v665
        %v670 = vadd.f32 %v660, %v665
        %v671 = vmax.f32 %v667, 0.0
        %v672 = vmax.f32 %v668, 0.0
        %v673 = vmax.f32 %v669, 0.0
        %v674 = vmax.f32 %v670, 0.0
        %v675 = vpack.c.bf16 %v672, %v671
        %v676 = vpack.c.bf16 %v674, %v673
        %v677 = vpack.c.bf16 %v336, %v335
        %v678 = vpack.c.bf16 %v338, %v337
        %v679 = vld [vmem:[%s8] sm:$0xf]
        %v680 = vld [vmem:[%s8 + $0x4] sm:$0xf]
        %v681 = vld [vmem:[%s8 + $0x8] sm:$0xf]
        %v682 = vld [vmem:[%s8 + $0xc] sm:$0xf]
        %v683 = vld [vmem:[%s8 + $0x10] sm:$0xf]
        %v684 = vld [vmem:[%s8 + $0x14] sm:$0xf]
        %v685 = vld [vmem:[%s8 + $0x18] sm:$0xf]
        %v686 = vld [vmem:[%s8 + $0x1c] sm:$0xf]
        %v687 = vld [vmem:[%s8 + $0x20] sm:$0xf]
        %v688 = vld [vmem:[%s8 + $0x24] sm:$0xf]
        %v689 = vld [vmem:[%s8 + $0x28] sm:$0xf]
        %v690 = vld [vmem:[%s8 + $0x2c] sm:$0xf]
        %v691 = vld [vmem:[%s8 + $0x30] sm:$0xf]
        %v692 = vld [vmem:[%s8 + $0x34] sm:$0xf]
        %v693 = vld [vmem:[%s8 + $0x38] sm:$0xf]
        %v694 = vld [vmem:[%s8 + $0x3c] sm:$0xf]
        %v711 = vunpack.c.l.b16 %v679
        %v712 = vunpack.c.l.b16 %v680
        %v713 = vunpack.c.l.b16 %v681
        %v714 = vunpack.c.l.b16 %v682
        %v715 = vunpack.c.l.b16 %v683
        %v716 = vunpack.c.l.b16 %v684
        %v717 = vunpack.c.l.b16 %v685
        %v718 = vunpack.c.l.b16 %v686
        %v719 = vunpack.c.l.b16 %v687
        %v720 = vunpack.c.l.b16 %v688
        %v721 = vunpack.c.l.b16 %v689
        %v722 = vunpack.c.l.b16 %v690
        %v723 = vunpack.c.l.b16 %v691
        %v724 = vunpack.c.l.b16 %v692
        %v725 = vunpack.c.l.b16 %v693
        %v726 = vunpack.c.l.b16 %v694
        %v727 = vpack.c.b16 %v712, %v711
        %v728 = vpack.c.b16 %v714, %v713
        %v729 = vpack.c.b16 %v716, %v715
        %v730 = vpack.c.b16 %v718, %v717
        %v731 = vpack.c.b16 %v720, %v719
        %v732 = vpack.c.b16 %v722, %v721
        %v733 = vpack.c.b16 %v724, %v723
        %v734 = vpack.c.b16 %v726, %v725
        %743 = vmatprep.subr.bf16.mxu0 0
        %744 = vmatpush1.bf16.msra.mxu0 %v727
        %745 = vmatprep.subr.bf16.mxu0 0
        %746 = vmatpush1.bf16.msra.mxu0 %v728
        %747 = vmatprep.subr.bf16.mxu0 0
        %748 = vmatpush1.bf16.msra.mxu0 %v729
        %749 = vmatprep.subr.bf16.mxu0 0
        %750 = vmatpush1.bf16.msra.mxu0 %v730
        %751 = vmatprep.subr.bf16.mxu0 0
        %752 = vmatpush1.bf16.msra.mxu0 %v731
        %753 = vmatprep.subr.bf16.mxu0 0
        %754 = vmatpush1.bf16.msra.mxu0 %v732
        %755 = vmatprep.subr.bf16.mxu0 0
        %756 = vmatpush1.bf16.msra.mxu0 %v733
        %757 = vmatprep.subr.bf16.mxu0 0
        %758 = vmatpush1.bf16.msra.mxu0 %v734
        %759 = vmatprep.subr.bf16.mxu0 0
        %760 = vmatpush1.bf16.msra.mxu0 0
        %761 = vmatprep.subr.bf16.mxu0 0
        %762 = vmatpush1.bf16.msra.mxu0 0
        %763 = vmatprep.subr.bf16.mxu0 0
        %764 = vmatpush1.bf16.msra.mxu0 0
        %765 = vmatprep.subr.bf16.mxu0 0
        %766 = vmatpush1.bf16.msra.mxu0 0
        %767 = vmatprep.subr.bf16.mxu0 0
        %768 = vmatpush1.bf16.msra.mxu0 0
        %769 = vmatprep.subr.bf16.mxu0 0
        %770 = vmatpush1.bf16.msra.mxu0 0
        %771 = vmatprep.subr.bf16.mxu0 0
        %772 = vmatpush1.bf16.msra.mxu0 0
        %773 = vmatprep.subr.bf16.mxu0 0
        %774 = vmatpush1.bf16.msra.mxu0 0
        %775 = vmatprep.mubr.bf16.mxu0 0
        %776 = vmatmul.mubr.bf16.gmra.mrb[0].mxu0 %v677
        %v777 = vpop.f32.mrb[0].mxu0
        %v778 = vadd.f32 0.0, %v777
        %v779 = vpop.f32.mrb[0].mxu0
        %v780 = vpop.f32.mrb[0].mxu0
        %v781 = vadd.f32 0.0, %v780
        %v782 = vpop.f32.mrb[0].mxu0
        %783 = vmatprep.mubr.bf16.mxu0 0
        %784 = vmatmul.mubr.bf16.gmra.mrb[0].mxu0 %v678
        %v785 = vpop.f32.mrb[0].mxu0
        %v786 = vadd.f32 0.0, %v785
        %v787 = vpop.f32.mrb[0].mxu0
        %v788 = vpop.f32.mrb[0].mxu0
        %v789 = vadd.f32 0.0, %v788
        %v790 = vpop.f32.mrb[0].mxu0
        %791 = vdwg.mxu0
        %v808 = vunpack.c.l.b16 %v359
        %v809 = vunpack.c.l.b16 %v360
        %v810 = vunpack.c.l.b16 %v361
        %v811 = vunpack.c.l.b16 %v362
        %v812 = vunpack.c.l.b16 %v363
        %v813 = vunpack.c.l.b16 %v364
        %v814 = vunpack.c.l.b16 %v365
        %v815 = vunpack.c.l.b16 %v366
        %v816 = vunpack.c.l.b16 %v367
        %v817 = vunpack.c.l.b16 %v368
        %v818 = vunpack.c.l.b16 %v369
        %v819 = vunpack.c.l.b16 %v370
        %v820 = vunpack.c.l.b16 %v371
        %v821 = vunpack.c.l.b16 %v372
        %v822 = vunpack.c.l.b16 %v373
        %v823 = vunpack.c.l.b16 %v374
        %v824 = vpack.c.b16 %v809, %v808
        %v825 = vpack.c.b16 %v811, %v810
        %v826 = vpack.c.b16 %v813, %v812
        %v827 = vpack.c.b16 %v815, %v814
        %v828 = vpack.c.b16 %v817, %v816
        %v829 = vpack.c.b16 %v819, %v818
        %v830 = vpack.c.b16 %v821, %v820
        %v831 = vpack.c.b16 %v823, %v822
        %840 = vmatprep.subr.bf16.mxu0 0
        %841 = vmatpush1.bf16.msra.mxu0 %v824
        %842 = vmatprep.subr.bf16.mxu0 0
        %843 = vmatpush1.bf16.msra.mxu0 %v825
        %844 = vmatprep.subr.bf16.mxu0 0
        %845 = vmatpush1.bf16.msra.mxu0 %v826
        %846 = vmatprep.subr.bf16.mxu0 0
        %847 = vmatpush1.bf16.msra.mxu0 %v827
        %848 = vmatprep.subr.bf16.mxu0 0
        %849 = vmatpush1.bf16.msra.mxu0 %v828
        %850 = vmatprep.subr.bf16.mxu0 0
        %851 = vmatpush1.bf16.msra.mxu0 %v829
        %852 = vmatprep.subr.bf16.mxu0 0
        %853 = vmatpush1.bf16.msra.mxu0 %v830
        %854 = vmatprep.subr.bf16.mxu0 0
        %855 = vmatpush1.bf16.msra.mxu0 %v831
        %856 = vmatprep.subr.bf16.mxu0 0
        %857 = vmatpush1.bf16.msra.mxu0 0
        %858 = vmatprep.subr.bf16.mxu0 0
        %859 = vmatpush1.bf16.msra.mxu0 0
        %860 = vmatprep.subr.bf16.mxu0 0
        %861 = vmatpush1.bf16.msra.mxu0 0
        %862 = vmatprep.subr.bf16.mxu0 0
        %863 = vmatpush1.bf16.msra.mxu0 0
        %864 = vmatprep.subr.bf16.mxu0 0
        %865 = vmatpush1.bf16.msra.mxu0 0
        %866 = vmatprep.subr.bf16.mxu0 0
        %867 = vmatpush1.bf16.msra.mxu0 0
        %868 = vmatprep.subr.bf16.mxu0 0
        %869 = vmatpush1.bf16.msra.mxu0 0
        %870 = vmatprep.subr.bf16.mxu0 0
        %871 = vmatpush1.bf16.msra.mxu0 0
        %872 = vmatprep.mubr.bf16.mxu0 0
        %873 = vmatmul.mubr.bf16.gmra.mrb[0].mxu0 %v675
        %v874 = vpop.f32.mrb[0].mxu0
        %v875 = vadd.f32 %v778, %v874
        %v876 = vpop.f32.mrb[0].mxu0
        %v877 = vpop.f32.mrb[0].mxu0
        %v878 = vadd.f32 %v781, %v877
        %v879 = vpop.f32.mrb[0].mxu0
        %880 = vmatprep.mubr.bf16.mxu0 0
        %881 = vmatmul.mubr.bf16.gmra.mrb[0].mxu0 %v676
        %v882 = vpop.f32.mrb[0].mxu0
        %v883 = vadd.f32 %v786, %v882
        %v884 = vpop.f32.mrb[0].mxu0
        %v885 = vpop.f32.mrb[0].mxu0
        %v886 = vadd.f32 %v789, %v885
        %v887 = vpop.f32.mrb[0].mxu0
        %888 = vdwg.mxu0
        %v889 = vld [vmem:[%s7] sm:$0x1]
        %v891 = vlaneseq
        %v892 = vshrl.u32 %v891, 7
        %v893 = vsub.s32 0, %v892
        %v894 = vrot.slane %v889, %v893
        %v896 = vadd.f32 %v875, %v894
        %v897 = vadd.f32 %v878, %v894
        %v898 = vadd.f32 %v883, %v894
        %v899 = vadd.f32 %v886, %v894
        %v900 = vmax.f32 %v896, 0.0
        %v901 = vmax.f32 %v897, 0.0
        %v902 = vmax.f32 %v898, 0.0
        %v903 = vmax.f32 %v899, 0.0
        %904 = vst [vmem:[%s326] sm:$0xff] %v900
        %905 = vst [vmem:[%s326 + $0x8] sm:$0xff] %v901
        %906 = vst [vmem:[%s326 + $0x10] sm:$0xff] %v902
        %907 = vst [vmem:[%s326 + $0x18] sm:$0xff] %v903
        %s908 = sand.u32 %s225, 1
        %s909 = scalar_lea.sflag [#allocation3], %s908
        %s910 = sand.u32 %s225, 1
        %s911 = smul.addr %s910, 32
        %s912 = scalar_lea.vmem [#allocation2], %s911
        // Predicated region
        $region57: #{residual_forward.1} parent=55 // pred_check
          %p913 = pneg %p235
        $region58: #{residual_forward.1} parent=55 // pred_check_branch
          %915 = sbr.rel (%p913) target = $region60
        $region59: #{residual_forward.1} parent=55 // pred_region
          %s916 = smul.u32 4, %s23
          %s918 = ssub.s32 512, 512
          %919 = vsyncadd %s909, %s918
          %s920 = smul.addr %s916, 128
          %s921 = scalar_lea.hbm %s9, %s920
          %s922 = sshll.u32 %s912, 4
          %s923 = int_to_ptr.vmem [resolvable:$true] %s922
          %928 = dma.vmem_to_hbm [thread:$0]  %s923, 512, %s921, %s909, 128, 128, 8
        $region60: #{residual_forward.1} parent=55 // pred_fallthru
          _
      $region56: #{residual_forward.1} parent=5 // pred_fallthru
        _
      %p929 = scmp.le.s32.totalorder 2, %s18
      // Predicated region
      $region61: #{residual_forward.1} parent=5 // pred_check
        %p930 = pneg %p929
      $region62: #{residual_forward.1} parent=5 // pred_check_branch
        %932 = sbr.rel (%p930) target = $region64
      $region63: #{residual_forward.1} parent=5 // pred_region
        %s933 = ssub.s32 %s18, 2
        // Predicated region
        $region65: #{residual_forward.1} parent=63 // pred_check
          %p934 = pneg %p241
        $region66: #{residual_forward.1} parent=63 // pred_check_branch
          %936 = sbr.rel (%p934) target = $region68
        $region67: #{residual_forward.1} parent=63 // pred_region
          %s937 = sand.u32 %s226, 1
          %s938 = scalar_lea.sflag [#allocation3], %s937
          %s939 = sand.u32 %s226, 1
          %s940 = smul.addr %s939, 32
          %s941 = scalar_lea.vmem [#allocation2], %s940
          %942 = dma.done %s938, 512
        $region68: #{residual_forward.1} parent=63 // pred_fallthru
          _
      $region64: #{residual_forward.1} parent=5 // pred_fallthru
        _
    $region6: #{residual_forward.1} parent=1 // loop_footer
      %s22 = sadd.s32 1, %s18
    $region7: #{residual_forward.1} parent=1 // loop_footer_branch
      %17 = sbr.rel target = $region3
    $region8: #{residual_forward.1} parent=1 // loop_exit
      _
    %943 = vsyncpa [#allocation3], 1
    %s944 = scalar_lea.sflag [#allocation3], 1
    %945 = vsyncpa %s944, 1

</llo_original>
